<compile_context>
chip_gen: v7x
topology: tpu7x:2x2x1
jax: 0.10.0
libtpu: 0.0.40
codegen_flags: <defaults>
</compile_context>

<pallas_src>
import functools
import math

import jax
import jax.numpy as jnp
from jax.experimental import pallas as pl
from jax.experimental.pallas import tpu as pltpu

_LANES = 128
_SUBLANES = 8


def _dice_partial_kernel(x_ref, y_ref, inter_ref, union_ref, *,
                         rows_total, tr, chunk_rows, tiles_per_split,
                         needs_mask):
    """Accumulate per-channel partial intersection/union sums.

    x_ref, y_ref        : (tc, tr, 128) tile of the flattened volume.
    inter_ref, union_ref: (tc, 8, 128) full-sublane accumulators, VMEM-resident
                          across the innermost ("arbitrary") grid axis.
    """
    s = pl.program_id(2)     # reduction-split index (parallel; v7x 2nd TC)
    ti = pl.program_id(3)    # reduction tile index within the split

    @pl.when(ti == 0)
    def _():
        inter_ref[...] = jnp.zeros_like(inter_ref)
        union_ref[...] = jnp.zeros_like(union_ref)

    tc = x_ref.shape[0]
    n_chunks = tr // chunk_rows
    groups = chunk_rows // _SUBLANES
    row0 = (s * tiles_per_split + ti) * tr   # global (unclamped) row offset

    def body(i, carry):
        inter_acc, union_acc = carry
        off = pl.multiple_of(i * chunk_rows, chunk_rows)
        x = x_ref[:, pl.ds(off, chunk_rows), :].astype(jnp.float32)
        y = y_ref[:, pl.ds(off, chunk_rows), :].astype(jnp.float32)
        if needs_mask:
            # Mask rows at/after rows_total (ragged last tile + phantom tiles
            # introduced by the 2-way reduction split). Zeros are neutral for
            # both intersection and union sums.
            rows = row0 + off + jax.lax.broadcasted_iota(
                jnp.int32, (1, chunk_rows, 1), 1)
            valid = rows < rows_total
            x = jnp.where(valid, x, 0.0)
            y = jnp.where(valid, y, 0.0)
        # Group sublanes in 8s so the reduction is pure vreg-by-vreg VALU adds.
        xr = x.reshape(tc, groups, _SUBLANES, _LANES)
        yr = y.reshape(tc, groups, _SUBLANES, _LANES)
        inter_acc = inter_acc + jnp.sum(xr * yr, axis=1)
        union_acc = union_acc + jnp.sum(xr + yr, axis=1)
        return inter_acc, union_acc

    zeros = jnp.zeros((tc, _SUBLANES, _LANES), jnp.float32)
    inter_p, union_p = jax.lax.fori_loop(0, n_chunks, body, (zeros, zeros),
                                         unroll=True)
    inter_ref[...] += inter_p
    union_ref[...] += union_p


def _pick_tiles(c, r, itemsize, *,
                target_block_bytes=6 << 20,      # per-input DMA block
                chunk_target_bytes=512 << 10,    # per-input f32 working set
                max_channels_per_block=256):
    """Pick (tc, tr, chunk_rows): channel block, sublane rows per grid tile,
    and sublane rows per in-kernel accumulation chunk."""
    tc = min(c, max_channels_per_block)          # guard the large-c VMEM cliff

    r_up = max(_SUBLANES, pl.cdiv(r, _SUBLANES) * _SUBLANES)
    tr = target_block_bytes // (tc * _LANES * itemsize)
    tr = max(_SUBLANES, (tr // _SUBLANES) * _SUBLANES)
    tr = min(tr, r_up)

    chunk_rows = chunk_target_bytes // (tc * _LANES * 4)
    chunk_rows = max(_SUBLANES, (chunk_rows // _SUBLANES) * _SUBLANES)
    chunk_rows = min(chunk_rows, tr)
    tr = max(chunk_rows, (tr // chunk_rows) * chunk_rows)  # tr % chunk == 0
    return tc, tr, chunk_rows


def dice_loss(inputs: jax.Array, targets: jax.Array,
              smooth: float = 1.0) -> jax.Array:
    """Pallas implementation of DiceLoss.forward for (b, c, v, x, y, z)."""
    assert inputs.shape == targets.shape
    assert inputs.ndim >= 3
    b, c = inputs.shape[0], inputs.shape[1]
    m = math.prod(inputs.shape[2:])

    # Free, contiguous reshape (no transpose): (b, c, v, x, y, z) -> (b, c, m).
    x3d = inputs.reshape(b, c, m)
    y3d = targets.reshape(b, c, m)

    # Only lane alignment may require padding (<= 127 elems per (b, c) row and
    # rare for volumetric shapes); the common m % 128 == 0 case is copy-free.
    # Row-tile raggedness is handled by in-kernel masking, never by padding.
    m128 = pl.cdiv(m, _LANES) * _LANES
    if m128 != m:
        pad = ((0, 0), (0, 0), (0, m128 - m))
        x3d = jnp.pad(x3d, pad)   # zeros are neutral for inter and union
        y3d = jnp.pad(y3d, pad)

    r = m128 // _LANES
    itemsize = jnp.dtype(inputs.dtype).itemsize
    tc, tr, chunk_rows = _pick_tiles(c, r, itemsize)

    num_c_blocks = pl.cdiv(c, tc)
    num_tiles = pl.cdiv(r, tr)
    # Split the reduction range in two (extra "parallel" axis) only when the
    # number of independent parallel units is odd, so both v7x TensorCores stay
    # busy (e.g. b = 1); no-op on single-TC v5e/v6e.
    parallel_units = b * num_c_blocks
    splits = 2 if (num_tiles >= 2 and parallel_units % 2 == 1) else 1
    tiles_per_split = pl.cdiv(num_tiles, splits)
    has_phantom = splits * tiles_per_split != num_tiles
    needs_mask = (r % tr != 0) or has_phantom

    x4d = x3d.reshape(b, c, r, _LANES)   # free reshape (contiguous)
    y4d = y3d.reshape(b, c, r, _LANES)

    if has_phantom:
        def row_block(s, ti):
            # Phantom tiles re-read the last block; their rows are fully
            # masked in-kernel, so the duplicate read is correctness-neutral.
            return jnp.minimum(s * tiles_per_split + ti, num_tiles - 1)
    else:
        def row_block(s, ti):
            return s * tiles_per_split + ti

    in_spec = pl.BlockSpec(
        (None, tc, tr, _LANES),
        lambda bi, ci, s, ti: (bi, ci, row_block(s, ti), 0))
    out_spec = pl.BlockSpec(
        (None, None, tc, _SUBLANES, _LANES),
        lambda bi, ci, s, ti: (bi, s, ci, 0, 0))

    kernel = functools.partial(
        _dice_partial_kernel, rows_total=r, tr=tr, chunk_rows=chunk_rows,
        tiles_per_split=tiles_per_split, needs_mask=needs_mask)

    acc_shape = jax.ShapeDtypeStruct((b, splits, c, _SUBLANES, _LANES),
                                     jnp.float32)
    out_bytes = 2 * b * splits * c * _SUBLANES * _LANES * 4
    cost = pl.CostEstimate(
        flops=4 * b * c * m, transcendentals=0,
        bytes_accessed=2 * b * c * m128 * itemsize + out_bytes)

    inter_p, union_p = pl.pallas_call(
        kernel,
        out_shape=(acc_shape, acc_shape),
        grid_spec=pltpu.PrefetchScalarGridSpec(
            num_scalar_prefetch=0,
            grid=(b, num_c_blocks, splits, tiles_per_split),
            in_specs=[in_spec, in_spec],
            out_specs=[out_spec, out_spec],
        ),
        compiler_params=pltpu.CompilerParams(
            dimension_semantics=("parallel", "parallel", "parallel",
                                 "arbitrary"),
            vmem_limit_bytes=48 * 1024 * 1024,
        ),
        cost_estimate=cost,
    )(x4d, y4d)

    # Tiny final combine (b * splits * c * 8 * 128 floats) + dice formula.
    inter = jnp.sum(inter_p, axis=(0, 1, 3, 4))   # (c,)
    union = jnp.sum(union_p, axis=(0, 1, 3, 4))   # (c,)
    dice = (2.0 * inter + float(smooth)) / (union + float(smooth))
    return 1.0 - jnp.mean(dice)


def _dice_loss_ref(inputs, targets, smooth=1.0):
    xf = inputs.astype(jnp.float32)
    yf = targets.astype(jnp.float32)
    inter = jnp.sum(xf * yf, axis=(0, 2, 3, 4, 5))  # -> (c,)
    union = jnp.sum(xf + yf, axis=(0, 2, 3, 4, 5))  # -> (c,)
    dice = (2.0 * inter + smooth) / (union + smooth)
    return 1.0 - dice.mean()


if __name__ == "__main__":
    key = jax.random.PRNGKey(0)
    k1, k2 = jax.random.split(key)

    # Small shapes consistent with (b, c, v, x, y, z).
    b, c, v, x, y, z = 2, 4, 2, 8, 8, 16
    inputs = jax.nn.sigmoid(jax.random.normal(k1, (b, c, v, x, y, z),
                                              jnp.float32))
    targets = (jax.random.uniform(k2, (b, c, v, x, y, z)) > 0.5).astype(
        jnp.float32)

    out = dice_loss(inputs, targets, smooth=1.0)
    out = jax.block_until_ready(out)

    ref = _dice_loss_ref(inputs, targets, smooth=1.0)
    assert jnp.allclose(out, ref, atol=1e-5, rtol=1e-5), (out, ref)

    print("KERNEL_OK")
</pallas_src>

<mosaic_0001>
module attributes {stable_mosaic.version = 11 : i64} {
  func.func @_dice_partial_kernel(%arg0: i32, %arg1: i32, %arg2: i32, %arg3: i32, %arg4: memref<1x4x16x128xf32, #tpu.memory_space<vmem>>, %arg5: memref<1x4x16x128xf32, #tpu.memory_space<vmem>>, %arg6: memref<1x1x4x8x128xf32, #tpu.memory_space<vmem>>, %arg7: memref<1x1x4x8x128xf32, #tpu.memory_space<vmem>>) attributes {dimension_semantics = [#tpu.dimension_semantics<parallel>, #tpu.dimension_semantics<parallel>, #tpu.dimension_semantics<parallel>, #tpu.dimension_semantics<arbitrary>], iteration_bounds = array<i64: 2, 1, 1, 1>, scalar_prefetch = 0 : i64, scratch_operands = 0 : i64, tpu.core_type = #tpu.core_type<tc>, window_params = [{transform_indices = @transform_0, window_bounds = array<i64: 1, 4, 16, 128>}, {transform_indices = @transform_1, window_bounds = array<i64: 1, 4, 16, 128>}, {transform_indices = @transform_2, window_bounds = array<i64: 1, 1, 4, 8, 128>}, {transform_indices = @transform_3, window_bounds = array<i64: 1, 1, 4, 8, 128>}]} {
    %c0_i32 = arith.constant 0 : i32
    %0 = arith.cmpi eq, %arg3, %c0_i32 : i32
    %1 = arith.extui %0 : i1 to i32
    %c0_i32_0 = arith.constant 0 : i32
    %2 = arith.cmpi ne, %1, %c0_i32_0 : i32
    scf.if %2 {
      %cst_29 = arith.constant 0.000000e+00 : f32
      %32 = vector.broadcast %cst_29 : f32 to vector<4x8x128xf32>
      %c0_30 = arith.constant 0 : index
      %c0_31 = arith.constant 0 : index
      %c0_32 = arith.constant 0 : index
      %c0_33 = arith.constant 0 : index
      %c0_34 = arith.constant 0 : index
      %33 = vector.load %arg6[%c0_30, %c0_31, %c0_32, %c0_33, %c0_34] : memref<1x1x4x8x128xf32, #tpu.memory_space<vmem>>, vector<1x1x4x8x128xf32>
      %34 = vector.shape_cast %33 : vector<1x1x4x8x128xf32> to vector<4x8x128xf32>
      %35 = vector.shape_cast %32 : vector<4x8x128xf32> to vector<1x1x4x8x128xf32>
      tpu.vector_store %arg6[%c0_30, %c0_31, %c0_32, %c0_33, %c0_34], %35 {strides = array<i32>} : memref<1x1x4x8x128xf32, #tpu.memory_space<vmem>>, vector<1x1x4x8x128xf32>,
      %cst_35 = arith.constant 0.000000e+00 : f32
      %36 = vector.broadcast %cst_35 : f32 to vector<4x8x128xf32>
      %c0_36 = arith.constant 0 : index
      %c0_37 = arith.constant 0 : index
      %c0_38 = arith.constant 0 : index
      %c0_39 = arith.constant 0 : index
      %c0_40 = arith.constant 0 : index
      %37 = vector.load %arg7[%c0_36, %c0_37, %c0_38, %c0_39, %c0_40] : memref<1x1x4x8x128xf32, #tpu.memory_space<vmem>>, vector<1x1x4x8x128xf32>
      %38 = vector.shape_cast %37 : vector<1x1x4x8x128xf32> to vector<4x8x128xf32>
      %39 = vector.shape_cast %36 : vector<4x8x128xf32> to vector<1x1x4x8x128xf32>
      tpu.vector_store %arg7[%c0_36, %c0_37, %c0_38, %c0_39, %c0_40], %39 {strides = array<i32>} : memref<1x1x4x8x128xf32, #tpu.memory_space<vmem>>, vector<1x1x4x8x128xf32>,
    } else {
    }
    %cst = arith.constant 0.000000e+00 : f32
    %3 = vector.broadcast %cst : f32 to vector<4x8x128xf32>
    %c0_i32_1 = arith.constant 0 : i32
    %c16_i32 = arith.constant 16 : i32
    %4 = arith.muli %c0_i32_1, %c16_i32 : i32
    %5 = tpu.assume_multiple %4, 16 : i32
    %c0 = arith.constant 0 : index
    %c0_2 = arith.constant 0 : index
    %6 = arith.index_cast %5 : i32 to index
    %c0_3 = arith.constant 0 : index
    %7 = vector.load %arg4[%c0, %c0_2, %6, %c0_3] : memref<1x4x16x128xf32, #tpu.memory_space<vmem>>, vector<1x4x16x128xf32>
    %8 = vector.shape_cast %7 : vector<1x4x16x128xf32> to vector<4x16x128xf32>
    %c0_4 = arith.constant 0 : index
    %c0_5 = arith.constant 0 : index
    %9 = arith.index_cast %5 : i32 to index
    %c0_6 = arith.constant 0 : index
    %10 = vector.load %arg5[%c0_4, %c0_5, %9, %c0_6] : memref<1x4x16x128xf32, #tpu.memory_space<vmem>>, vector<1x4x16x128xf32>
    %11 = vector.shape_cast %10 : vector<1x4x16x128xf32> to vector<4x16x128xf32>
    %12 = vector.shape_cast %8 : vector<4x16x128xf32> to vector<4x2x8x128xf32>
    %13 = vector.shape_cast %11 : vector<4x16x128xf32> to vector<4x2x8x128xf32>
    %14 = arith.mulf %12, %13 : vector<4x2x8x128xf32>
    %cst_7 = arith.constant dense<0.000000e+00> : vector<4x8x128xf32>
    %15 = vector.multi_reduction <add>, %14, %cst_7 [1] : vector<4x2x8x128xf32> to vector<4x8x128xf32>
    %16 = arith.addf %3, %15 : vector<4x8x128xf32>
    %17 = arith.addf %12, %13 : vector<4x2x8x128xf32>
    %cst_8 = arith.constant dense<0.000000e+00> : vector<4x8x128xf32>
    %18 = vector.multi_reduction <add>, %17, %cst_8 [1] : vector<4x2x8x128xf32> to vector<4x8x128xf32>
    %19 = arith.addf %3, %18 : vector<4x8x128xf32>
    %c1_i32 = arith.constant 1 : i32
    %c0_9 = arith.constant 0 : index
    %c0_10 = arith.constant 0 : index
    %c0_11 = arith.constant 0 : index
    %c0_12 = arith.constant 0 : index
    %c0_13 = arith.constant 0 : index
    %20 = vector.load %arg6[%c0_9, %c0_10, %c0_11, %c0_12, %c0_13] : memref<1x1x4x8x128xf32, #tpu.memory_space<vmem>>, vector<1x1x4x8x128xf32>
    %21 = vector.shape_cast %20 : vector<1x1x4x8x128xf32> to vector<4x8x128xf32>
    %22 = arith.addf %21, %16 : vector<4x8x128xf32>
    %c0_14 = arith.constant 0 : index
    %c0_15 = arith.constant 0 : index
    %c0_16 = arith.constant 0 : index
    %c0_17 = arith.constant 0 : index
    %c0_18 = arith.constant 0 : index
    %23 = vector.load %arg6[%c0_14, %c0_15, %c0_16, %c0_17, %c0_18] : memref<1x1x4x8x128xf32, #tpu.memory_space<vmem>>, vector<1x1x4x8x128xf32>
    %24 = vector.shape_cast %23 : vector<1x1x4x8x128xf32> to vector<4x8x128xf32>
    %25 = vector.shape_cast %22 : vector<4x8x128xf32> to vector<1x1x4x8x128xf32>
    tpu.vector_store %arg6[%c0_14, %c0_15, %c0_16, %c0_17, %c0_18], %25 {strides = array<i32>} : memref<1x1x4x8x128xf32, #tpu.memory_space<vmem>>, vector<1x1x4x8x128xf32>,
    %c0_19 = arith.constant 0 : index
    %c0_20 = arith.constant 0 : index
    %c0_21 = arith.constant 0 : index
    %c0_22 = arith.constant 0 : index
    %c0_23 = arith.constant 0 : index
    %26 = vector.load %arg7[%c0_19, %c0_20, %c0_21, %c0_22, %c0_23] : memref<1x1x4x8x128xf32, #tpu.memory_space<vmem>>, vector<1x1x4x8x128xf32>
    %27 = vector.shape_cast %26 : vector<1x1x4x8x128xf32> to vector<4x8x128xf32>
    %28 = arith.addf %27, %19 : vector<4x8x128xf32>
    %c0_24 = arith.constant 0 : index
    %c0_25 = arith.constant 0 : index
    %c0_26 = arith.constant 0 : index
    %c0_27 = arith.constant 0 : index
    %c0_28 = arith.constant 0 : index
    %29 = vector.load %arg7[%c0_24, %c0_25, %c0_26, %c0_27, %c0_28] : memref<1x1x4x8x128xf32, #tpu.memory_space<vmem>>, vector<1x1x4x8x128xf32>
    %30 = vector.shape_cast %29 : vector<1x1x4x8x128xf32> to vector<4x8x128xf32>
    %31 = vector.shape_cast %28 : vector<4x8x128xf32> to vector<1x1x4x8x128xf32>
    tpu.vector_store %arg7[%c0_24, %c0_25, %c0_26, %c0_27, %c0_28], %31 {strides = array<i32>} : memref<1x1x4x8x128xf32, #tpu.memory_space<vmem>>, vector<1x1x4x8x128xf32>,
    return
  }
  func.func @transform_0(%arg0: i32, %arg1: i32, %arg2: i32, %arg3: i32) -> (i32, i32, i32, i32) {
    %c1_i32 = arith.constant 1 : i32
    %0 = arith.muli %arg2, %c1_i32 : i32
    %1 = arith.addi %0, %arg3 : i32
    %c0_i32 = arith.constant 0 : i32
    %c0_i32_0 = arith.constant 0 : i32
    return %arg0, %arg1, %1, %c0_i32 : i32, i32, i32, i32
  }
  func.func @transform_1(%arg0: i32, %arg1: i32, %arg2: i32, %arg3: i32) -> (i32, i32, i32, i32) {
    %c1_i32 = arith.constant 1 : i32
    %0 = arith.muli %arg2, %c1_i32 : i32
    %1 = arith.addi %0, %arg3 : i32
    %c0_i32 = arith.constant 0 : i32
    %c0_i32_0 = arith.constant 0 : i32
    return %arg0, %arg1, %1, %c0_i32 : i32, i32, i32, i32
  }
  func.func @transform_2(%arg0: i32, %arg1: i32, %arg2: i32, %arg3: i32) -> (i32, i32, i32, i32, i32) {
    %c0_i32 = arith.constant 0 : i32
    %c0_i32_0 = arith.constant 0 : i32
    %c0_i32_1 = arith.constant 0 : i32
    return %arg0, %arg2, %arg1, %c0_i32, %c0_i32_0 : i32, i32, i32, i32, i32
  }
  func.func @transform_3(%arg0: i32, %arg1: i32, %arg2: i32, %arg3: i32) -> (i32, i32, i32, i32, i32) {
    %c0_i32 = arith.constant 0 : i32
    %c0_i32_0 = arith.constant 0 : i32
    %c0_i32_1 = arith.constant 0 : i32
    return %arg0, %arg2, %arg1, %c0_i32, %c0_i32_0 : i32, i32, i32, i32, i32
  }
}

</mosaic_0001>

<llo_original>
// kernel: tpu_custom_call.1
$region0: #{tpu_custom_call.1}
  #allocation0 [shape = 'u32[]', space=smem, size = 0x4, offset = 0x4, fixed_abs, tag = 'smem constant byte address 0x4 - core index']
  #allocation1 [shape = 'u32[144,128]{1,0:T(1,128)}', space=vmem, size = 0x12000, scoped, tag = 'internal scratch']
  %s0 = inlined_call_operand.hbm [shape: f32[2,4,16,128], index: 0, kind: input, shape index: {}]
  %s1 = inlined_call_operand.hbm [shape: f32[2,4,16,128], index: 1, kind: input, shape index: {}]
  %s2 = inlined_call_operand.hbm [shape: f32[2,1,4,8,128], index: 2, kind: output, shape index: {0}]
  %s3 = inlined_call_operand.hbm [shape: f32[2,1,4,8,128], index: 3, kind: output, shape index: {1}]
  %4 = xla_tuple %s2, %s3
  %s5 = sld [smem:[#allocation0]]
  $region61: #{tpu_custom_call.1} parent=0
    _
  %s7 = ssub.s32 1, %s5
  %s8 = scalar_select 0, %s7, %s5
  $region1: #{tpu_custom_call.1} parent=0
    #allocation2 [shape = 'u8[65536]{0}', space=vmem, size = 0x10000, scoped, tag = 'input window, operand 0']
    #allocation3 [shape = 's32[2]{0}', space=sflag, size = 0x8, scoped, tag = 'scoped memory for tpu_custom_call.1']
    #allocation4 [shape = 's32[2]{0}', space=sflag, size = 0x8, scoped, tag = 'scoped memory for tpu_custom_call.1']
    #allocation5 [shape = 'u8[65536]{0}', space=vmem, size = 0x10000, scoped, tag = 'input window, operand 1']
    #allocation6 [shape = 's32[2]{0}', space=sflag, size = 0x8, scoped, tag = 'scoped memory for tpu_custom_call.1']
    #allocation7 [shape = 'u8[32768]{0}', space=vmem, size = 0x8000, scoped, tag = 'output window, operand 0']
    #allocation8 [shape = 'u8[32768]{0}', space=vmem, size = 0x8000, scoped, tag = 'output window, operand 1']
    #allocation9 [shape = 's32[2]{0}', space=sflag, size = 0x8, scoped, tag = 'scoped memory for tpu_custom_call.1']
    %9 = vsyncpa [#allocation3], 0
    %s10 = scalar_lea.sflag [#allocation3], 1
    %11 = vsyncpa %s10, 0
    %12 = vsyncpa [#allocation6], 0
    %s13 = scalar_lea.sflag [#allocation6], 1
    %14 = vsyncpa %s13, 0
    %15 = vsyncpa [#allocation4], 0
    %s16 = scalar_lea.sflag [#allocation4], 1
    %17 = vsyncpa %s16, 0
    %18 = vsyncpa [#allocation9], 0
    %s19 = scalar_lea.sflag [#allocation9], 1
    %20 = vsyncpa %s19, 0
    loop: start=0, step=1, limit=4
    $region2: #{tpu_custom_call.1} parent=1 // loop_pre_header
      _
    $region3: #{tpu_custom_call.1} parent=1 // loop_header
      %s22 = sphi 0, %s26
      %p23 = scmp.ge.s32.totalorder %s22, 4
      %s29 = sphi 0, %s55
      %s30 = sphi 0, %s51
      %s31 = sphi 0, %s47
      %s32 = sphi 0, %s43
      %s33 = sphi 0, %s29
      %s34 = sphi 0, %s30
      %s35 = sphi 0, %s31
      %s36 = sphi 0, %s32
      %s37 = sphi 0, %s33
      %s38 = sphi 0, %s34
      %s39 = sphi 0, %s35
      %s40 = sphi 0, %s36
      %s64 = sphi 0, %s66
      %s67 = sphi 0, %s64
      %s68 = sphi 0, %s67
      %s84 = sphi 0, %s68
      %s96 = sphi 0, %s98
      %s99 = sphi 0, %s96
      %s100 = sphi 0, %s99
      %s116 = sphi 0, %s100
      %s126 = sphi 0, %s128
      %s129 = sphi 0, %s126
      %s130 = sphi 0, %s129
      %s146 = sphi 0, %s130
      %s156 = sphi 0, %s158
      %s159 = sphi 0, %s156
      %s160 = sphi 0, %s159
      %s176 = sphi 0, %s160
    $region4: #{tpu_custom_call.1} parent=1 // loop_header_branch
      %25 = sbr.rel (%p23) target = $region8
    $region5: #{tpu_custom_call.1} parent=1 // loop_body
      %s27 = ssub.s32 %s22, 1
      %s28 = ssub.s32 %s22, 2
      %s41 = sadd.s32 1, %s32
      %p42 = scmp.ge.s32.totalorder %s41, 1
      %s43 = scalar_select %p42, 0, %s41
      %s44 = sadd.s32 1, %s31
      %s45 = scalar_select %p42, %s44, %s31
      %p46 = scmp.ge.s32.totalorder %s45, 1
      %s47 = scalar_select %p46, 0, %s45
      %s48 = sadd.s32 1, %s30
      %s49 = scalar_select %p46, %s48, %s30
      %p50 = scmp.ge.s32.totalorder %s49, 1
      %s51 = scalar_select %p50, 0, %s49
      %s52 = sadd.s32 1, %s29
      %s53 = scalar_select %p50, %s52, %s29
      %p54 = scmp.ge.s32.totalorder %s53, 2
      %s55 = scalar_select %p54, 0, %s53
      %s56 = sadd.s32 %s31, %s32
      %s57 = sadd.s32 %s47, %s43
      %s58 = ssub.s32 %s29, %s55
      %s59 = ssub.s32 %s30, %s51
      %s60 = sor.u32 %s58, %s59
      %s61 = ssub.s32 %s56, %s57
      %s62 = sor.u32 %s60, %s61
      %p63 = scmp.eq.s32.totalorder %s62, 0
      %s65 = sadd.s32 %s64, 1
      %s66 = scalar_select %p63, %s64, %s65
      %p69 = pneg %p63
      %p70 = scmp.eq.s32.totalorder %s22, 1
      %p71 = por %p69, %p70
      %p72 = scmp.ne.s32.totalorder %s64, %s67
      %p73 = scmp.eq.s32.totalorder %s22, 0
      %p74 = por %p72, %p73
      %p75 = scmp.ne.s32.totalorder %s64, %s67
      %p76 = scmp.eq.s32.totalorder %s27, 1
      %p77 = por %p75, %p76
      %p78 = scmp.ne.s32.totalorder %s67, %s68
      %p79 = scmp.eq.s32.totalorder %s27, 0
      %p80 = por %p78, %p79
      %p81 = scmp.ne.s32.totalorder %s67, %s68
      %p82 = scmp.eq.s32.totalorder %s28, 1
      %p83 = por %p81, %p82
      %p85 = scmp.ne.s32.totalorder %s68, %s84
      %p86 = scmp.eq.s32.totalorder %s28, 0
      %p87 = por %p85, %p86
      %s88 = sadd.s32 %s31, %s32
      %s89 = sadd.s32 %s47, %s43
      %s90 = ssub.s32 %s29, %s55
      %s91 = ssub.s32 %s30, %s51
      %s92 = sor.u32 %s90, %s91
      %s93 = ssub.s32 %s88, %s89
      %s94 = sor.u32 %s92, %s93
      %p95 = scmp.eq.s32.totalorder %s94, 0
      %s97 = sadd.s32 %s96, 1
      %s98 = scalar_select %p95, %s96, %s97
      %p101 = pneg %p95
      %p102 = scmp.eq.s32.totalorder %s22, 1
      %p103 = por %p101, %p102
      %p104 = scmp.ne.s32.totalorder %s96, %s99
      %p105 = scmp.eq.s32.totalorder %s22, 0
      %p106 = por %p104, %p105
      %p107 = scmp.ne.s32.totalorder %s96, %s99
      %p108 = scmp.eq.s32.totalorder %s27, 1
      %p109 = por %p107, %p108
      %p110 = scmp.ne.s32.totalorder %s99, %s100
      %p111 = scmp.eq.s32.totalorder %s27, 0
      %p112 = por %p110, %p111
      %p113 = scmp.ne.s32.totalorder %s99, %s100
      %p114 = scmp.eq.s32.totalorder %s28, 1
      %p115 = por %p113, %p114
      %p117 = scmp.ne.s32.totalorder %s100, %s116
      %p118 = scmp.eq.s32.totalorder %s28, 0
      %p119 = por %p117, %p118
      %s120 = ssub.s32 %s29, %s55
      %s121 = ssub.s32 %s31, %s47
      %s122 = sor.u32 %s120, %s121
      %s123 = ssub.s32 %s30, %s51
      %s124 = sor.u32 %s122, %s123
      %p125 = scmp.eq.s32.totalorder %s124, 0
      %s127 = sadd.s32 %s126, 1
      %s128 = scalar_select %p125, %s126, %s127
      %p131 = pneg %p125
      %p132 = scmp.eq.s32.totalorder %s22, 1
      %p133 = por %p131, %p132
      %p134 = scmp.ne.s32.totalorder %s126, %s129
      %p135 = scmp.eq.s32.totalorder %s22, 0
      %p136 = por %p134, %p135
      %p137 = scmp.ne.s32.totalorder %s126, %s129
      %p138 = scmp.eq.s32.totalorder %s27, 1
      %p139 = por %p137, %p138
      %p140 = scmp.ne.s32.totalorder %s129, %s130
      %p141 = scmp.eq.s32.totalorder %s27, 0
      %p142 = por %p140, %p141
      %p143 = scmp.ne.s32.totalorder %s129, %s130
      %p144 = scmp.eq.s32.totalorder %s28, 1
      %p145 = por %p143, %p144
      %p147 = scmp.ne.s32.totalorder %s130, %s146
      %p148 = scmp.eq.s32.totalorder %s28, 0
      %p149 = por %p147, %p148
      %s150 = ssub.s32 %s29, %s55
      %s151 = ssub.s32 %s31, %s47
      %s152 = sor.u32 %s150, %s151
      %s153 = ssub.s32 %s30, %s51
      %s154 = sor.u32 %s152, %s153
      %p155 = scmp.eq.s32.totalorder %s154, 0
      %s157 = sadd.s32 %s156, 1
      %s158 = scalar_select %p155, %s156, %s157
      %p161 = pneg %p155
      %p162 = scmp.eq.s32.totalorder %s22, 1
      %p163 = por %p161, %p162
      %p164 = scmp.ne.s32.totalorder %s156, %s159
      %p165 = scmp.eq.s32.totalorder %s22, 0
      %p166 = por %p164, %p165
      %p167 = scmp.ne.s32.totalorder %s156, %s159
      %p168 = scmp.eq.s32.totalorder %s27, 1
      %p169 = por %p167, %p168
      %p170 = scmp.ne.s32.totalorder %s159, %s160
      %p171 = scmp.eq.s32.totalorder %s27, 0
      %p172 = por %p170, %p171
      %p173 = scmp.ne.s32.totalorder %s159, %s160
      %p174 = scmp.eq.s32.totalorder %s28, 1
      %p175 = por %p173, %p174
      %p177 = scmp.ne.s32.totalorder %s160, %s176
      %p178 = scmp.eq.s32.totalorder %s28, 0
      %p179 = por %p177, %p178
      %p180 = scmp.le.s32.totalorder 1, %s22
      %p181 = scmp.lt.s32.totalorder %s22, 3
      %p182 = pnand %p180, %p181
      %p183 = pneg %p182
      // Predicated region
      $region9: #{tpu_custom_call.1} parent=5 // pred_check
        _
      $region10: #{tpu_custom_call.1} parent=5 // pred_check_branch
        %185 = sbr.rel (%p182) target = $region12
      $region11: #{tpu_custom_call.1} parent=5 // pred_region
        %s186 = ssub.s32 %s22, 1
      $region12: #{tpu_custom_call.1} parent=5 // pred_fallthru
        _
      %p187 = scmp.lt.s32.totalorder %s22, 2
      // Predicated region
      $region13: #{tpu_custom_call.1} parent=5 // pred_check
        %p188 = pneg %p187
      $region14: #{tpu_custom_call.1} parent=5 // pred_check_branch
        %190 = sbr.rel (%p188) target = $region16
      $region15: #{tpu_custom_call.1} parent=5 // pred_region
        // Predicated region
        $region17: #{tpu_custom_call.1} parent=15 // pred_check
          %p191 = pneg %p74
        $region18: #{tpu_custom_call.1} parent=15 // pred_check_branch
          %193 = sbr.rel (%p191) target = $region20
        $region19: #{tpu_custom_call.1} parent=15 // pred_region
          %s194 = sand.u32 %s64, 1
          %s195 = scalar_lea.sflag [#allocation3], %s194
          %s196 = sand.u32 %s64, 1
          %s197 = smul.addr %s196, 64
          %s198 = scalar_lea.vmem [#allocation2], %s197
          %s199 = sadd.s32 %s31, %s32
          %s200 = smul.u32 4, %s30
          %s201 = smul.u32 2, %s199
          %s203 = ssub.s32 1024, 1024
          %204 = vsyncadd %s195, %s203
          %s205 = smul.addr %s200, 2
          %s206 = sadd.s32 %s201, %s205
          %s207 = smul.addr %s29, 8
          %s208 = sadd.s32 %s206, %s207
          %s209 = smul.addr %s208, 128
          %s210 = scalar_lea.hbm %s0, %s209
          %s211 = sshll.u32 %s198, 4
          %s212 = int_to_ptr.vmem [resolvable:$true] %s211
          %217 = dma.hbm_to_vmem [thread:$0]  %s210, 1024, %s212, %s195, 128, 128, 8
        $region20: #{tpu_custom_call.1} parent=15 // pred_fallthru
          _
        // Predicated region
        $region21: #{tpu_custom_call.1} parent=15 // pred_check
          %p218 = pneg %p106
        $region22: #{tpu_custom_call.1} parent=15 // pred_check_branch
          %220 = sbr.rel (%p218) target = $region24
        $region23: #{tpu_custom_call.1} parent=15 // pred_region
          %s221 = sand.u32 %s96, 1
          %s222 = scalar_lea.sflag [#allocation6], %s221
          %s223 = sand.u32 %s96, 1
          %s224 = smul.addr %s223, 64
          %s225 = scalar_lea.vmem [#allocation5], %s224
          %s226 = sadd.s32 %s31, %s32
          %s227 = smul.u32 4, %s30
          %s228 = smul.u32 2, %s226
          %s230 = ssub.s32 1024, 1024
          %231 = vsyncadd %s222, %s230
          %s232 = smul.addr %s227, 2
          %s233 = sadd.s32 %s228, %s232
          %s234 = smul.addr %s29, 8
          %s235 = sadd.s32 %s233, %s234
          %s236 = smul.addr %s235, 128
          %s237 = scalar_lea.hbm %s1, %s236
          %s238 = sshll.u32 %s225, 4
          %s239 = int_to_ptr.vmem [resolvable:$true] %s238
          %244 = dma.hbm_to_vmem [thread:$0]  %s237, 1024, %s239, %s222, 128, 128, 8
        $region24: #{tpu_custom_call.1} parent=15 // pred_fallthru
          _
      $region16: #{tpu_custom_call.1} parent=5 // pred_fallthru
        _
      %p245 = scmp.le.s32.totalorder 1, %s22
      %p246 = scmp.lt.s32.totalorder %s22, 3
      %p247 = pnand %p245, %p246
      %p248 = pneg %p247
      // Predicated region
      $region25: #{tpu_custom_call.1} parent=5 // pred_check
        _
      $region26: #{tpu_custom_call.1} parent=5 // pred_check_branch
        %250 = sbr.rel (%p247) target = $region28
      $region27: #{tpu_custom_call.1} parent=5 // pred_region
        %s251 = ssub.s32 %s22, 1
        %s252 = sand.u32 %s67, 1
        %s253 = scalar_lea.sflag [#allocation3], %s252
        %s254 = sand.u32 %s67, 1
        %s255 = smul.addr %s254, 64
        %s256 = scalar_lea.vmem [#allocation2], %s255
        // Predicated region
        $region29: #{tpu_custom_call.1} parent=27 // pred_check
          %p257 = pneg %p80
        $region30: #{tpu_custom_call.1} parent=27 // pred_check_branch
          %259 = sbr.rel (%p257) target = $region32
        $region31: #{tpu_custom_call.1} parent=27 // pred_region
          %260 = dma.done %s253, 1024
        $region32: #{tpu_custom_call.1} parent=27 // pred_fallthru
          _
        %s261 = sand.u32 %s99, 1
        %s262 = scalar_lea.sflag [#allocation6], %s261
        %s263 = sand.u32 %s99, 1
        %s264 = smul.addr %s263, 64
        %s265 = scalar_lea.vmem [#allocation5], %s264
        // Predicated region
        $region33: #{tpu_custom_call.1} parent=27 // pred_check
          %p266 = pneg %p112
        $region34: #{tpu_custom_call.1} parent=27 // pred_check_branch
          %268 = sbr.rel (%p266) target = $region36
        $region35: #{tpu_custom_call.1} parent=27 // pred_region
          %269 = dma.done %s262, 1024
        $region36: #{tpu_custom_call.1} parent=27 // pred_fallthru
          _
        %s270 = sand.u32 %s67, 1
        %s271 = scalar_lea.sflag [#allocation3], %s270
        %s272 = sand.u32 %s67, 1
        %s273 = smul.addr %s272, 64
        %s274 = scalar_lea.vmem [#allocation2], %s273
        %p275 = pneg %p80
        %p276 = pneg %p77
        %s277 = sand.u32 %s99, 1
        %s278 = scalar_lea.sflag [#allocation6], %s277
        %s279 = sand.u32 %s99, 1
        %s280 = smul.addr %s279, 64
        %s281 = scalar_lea.vmem [#allocation5], %s280
        %p282 = pneg %p112
        %p283 = pneg %p109
        %p284 = pneg %p142
        %p285 = pneg %p139
        %s286 = sand.u32 %s129, 1
        %s287 = scalar_lea.sflag [#allocation4], %s286
        %s288 = sand.u32 %s129, 1
        %s289 = smul.addr %s288, 32
        %s290 = scalar_lea.vmem [#allocation7], %s289
        %p291 = pneg %p172
        %p292 = pneg %p169
        %s293 = sand.u32 %s159, 1
        %s294 = scalar_lea.sflag [#allocation9], %s293
        %s295 = sand.u32 %s159, 1
        %s296 = smul.addr %s295, 32
        %s297 = scalar_lea.vmem [#allocation8], %s296
        %s298 = sadd.s32 %s35, %s36
        %s299 = smul.u32 4, %s34
        %s300 = smul.u32 2, %s298
        %s301 = sadd.s32 %s35, %s36
        %s302 = smul.u32 4, %s34
        %s303 = smul.u32 2, %s301
        %s304 = smul.u32 4, %s34
        %s305 = smul.u32 4, %s34
        %p306 = scmp.eq.s32.totalorder %s36, 0
        // Predicated region
        $region37: #{tpu_custom_call.1} parent=27 // pred_check
          %p307 = pneg %p306
        $region38: #{tpu_custom_call.1} parent=27 // pred_check_branch
          %309 = sbr.rel (%p307) target = $region40
        $region39: #{tpu_custom_call.1} parent=27 // pred_region
          %310 = vst [vmem:[%s290] sm:$0xff] 0.0
          %311 = vst [vmem:[%s290 + $0x8] sm:$0xff] 0.0
          %312 = vst [vmem:[%s290 + $0x10] sm:$0xff] 0.0
          %313 = vst [vmem:[%s290 + $0x18] sm:$0xff] 0.0
          %314 = vst [vmem:[%s297] sm:$0xff] 0.0
          %315 = vst [vmem:[%s297 + $0x8] sm:$0xff] 0.0
          %316 = vst [vmem:[%s297 + $0x10] sm:$0xff] 0.0
          %317 = vst [vmem:[%s297 + $0x18] sm:$0xff] 0.0
        $region40: #{tpu_custom_call.1} parent=27 // pred_fallthru
          _
        %v318 = vld [vmem:[%s256] sm:$0xff]
        %v319 = vld [vmem:[%s256 + $0x8] sm:$0xff]
        %v320 = vld [vmem:[%s256 + $0x10] sm:$0xff]
        %v321 = vld [vmem:[%s256 + $0x18] sm:$0xff]
        %v322 = vld [vmem:[%s256 + $0x20] sm:$0xff]
        %v323 = vld [vmem:[%s256 + $0x28] sm:$0xff]
        %v324 = vld [vmem:[%s256 + $0x30] sm:$0xff]
        %v325 = vld [vmem:[%s256 + $0x38] sm:$0xff]
        %v326 = vld [vmem:[%s265] sm:$0xff]
        %v327 = vld [vmem:[%s265 + $0x8] sm:$0xff]
        %v328 = vld [vmem:[%s265 + $0x10] sm:$0xff]
        %v329 = vld [vmem:[%s265 + $0x18] sm:$0xff]
        %v330 = vld [vmem:[%s265 + $0x20] sm:$0xff]
        %v331 = vld [vmem:[%s265 + $0x28] sm:$0xff]
        %v332 = vld [vmem:[%s265 + $0x30] sm:$0xff]
        %v333 = vld [vmem:[%s265 + $0x38] sm:$0xff]
        %v334 = vmul.f32 %v318, %v326
        %v335 = vmul.f32 %v319, %v327
        %v336 = vmul.f32 %v320, %v328
        %v337 = vmul.f32 %v321, %v329
        %v338 = vmul.f32 %v322, %v330
        %v339 = vmul.f32 %v323, %v331
        %v340 = vmul.f32 %v324, %v332
        %v341 = vmul.f32 %v325, %v333
        %v342 = vadd.f32 %v334, %v335
        %v343 = vadd.f32 %v336, %v337
        %v344 = vadd.f32 %v338, %v339
        %v345 = vadd.f32 %v340, %v341
        %v346 = vadd.f32 %v342, 0.0
        %v347 = vadd.f32 %v343, 0.0
        %v348 = vadd.f32 %v344, 0.0
        %v349 = vadd.f32 %v345, 0.0
        %v350 = vadd.f32 %v318, %v326
        %v351 = vadd.f32 %v319, %v327
        %v352 = vadd.f32 %v320, %v328
        %v353 = vadd.f32 %v321, %v329
        %v354 = vadd.f32 %v322, %v330
        %v355 = vadd.f32 %v323, %v331
        %v356 = vadd.f32 %v324, %v332
        %v357 = vadd.f32 %v325, %v333
        %v358 = vadd.f32 %v350, %v351
        %v359 = vadd.f32 %v352, %v353
        %v360 = vadd.f32 %v354, %v355
        %v361 = vadd.f32 %v356, %v357
        %v362 = vadd.f32 %v358, 0.0
        %v363 = vadd.f32 %v359, 0.0
        %v364 = vadd.f32 %v360, 0.0
        %v365 = vadd.f32 %v361, 0.0
        %v366 = vld [vmem:[%s290] sm:$0xff]
        %v367 = vld [vmem:[%s290 + $0x8] sm:$0xff]
        %v368 = vld [vmem:[%s290 + $0x10] sm:$0xff]
        %v369 = vld [vmem:[%s290 + $0x18] sm:$0xff]
        %v370 = vadd.f32 %v366, %v346
        %v371 = vadd.f32 %v367, %v347
        %v372 = vadd.f32 %v368, %v348
        %v373 = vadd.f32 %v369, %v349
        %374 = vst [vmem:[%s290] sm:$0xff] %v370
        %375 = vst [vmem:[%s290 + $0x8] sm:$0xff] %v371
        %376 = vst [vmem:[%s290 + $0x10] sm:$0xff] %v372
        %377 = vst [vmem:[%s290 + $0x18] sm:$0xff] %v373
        %v378 = vld [vmem:[%s297] sm:$0xff]
        %v379 = vld [vmem:[%s297 + $0x8] sm:$0xff]
        %v380 = vld [vmem:[%s297 + $0x10] sm:$0xff]
        %v381 = vld [vmem:[%s297 + $0x18] sm:$0xff]
        %v382 = vadd.f32 %v378, %v362
        %v383 = vadd.f32 %v379, %v363
        %v384 = vadd.f32 %v380, %v364
        %v385 = vadd.f32 %v381, %v365
        %386 = vst [vmem:[%s297] sm:$0xff] %v382
        %387 = vst [vmem:[%s297 + $0x8] sm:$0xff] %v383
        %388 = vst [vmem:[%s297 + $0x10] sm:$0xff] %v384
        %389 = vst [vmem:[%s297 + $0x18] sm:$0xff] %v385
        %s390 = sand.u32 %s129, 1
        %s391 = scalar_lea.sflag [#allocation4], %s390
        %s392 = sand.u32 %s129, 1
        %s393 = smul.addr %s392, 32
        %s394 = scalar_lea.vmem [#allocation7], %s393
        %s395 = sand.u32 %s159, 1
        %s396 = scalar_lea.sflag [#allocation9], %s395
        %s397 = sand.u32 %s159, 1
        %s398 = smul.addr %s397, 32
        %s399 = scalar_lea.vmem [#allocation8], %s398
        // Predicated region
        $region41: #{tpu_custom_call.1} parent=27 // pred_check
          %p400 = pneg %p139
        $region42: #{tpu_custom_call.1} parent=27 // pred_check_branch
          %402 = sbr.rel (%p400) target = $region44
        $region43: #{tpu_custom_call.1} parent=27 // pred_region
          %s403 = smul.u32 4, %s34
          %s405 = ssub.s32 512, 512
          %406 = vsyncadd %s391, %s405
          %s407 = smul.addr %s35, 4
          %s408 = sadd.s32 %s403, %s407
          %s409 = smul.addr %s33, 4
          %s410 = sadd.s32 %s408, %s409
          %s411 = smul.addr %s410, 128
          %s412 = scalar_lea.hbm %s2, %s411
          %s413 = sshll.u32 %s394, 4
          %s414 = int_to_ptr.vmem [resolvable:$true] %s413
          %419 = dma.vmem_to_hbm [thread:$0]  %s414, 512, %s412, %s391, 128, 128, 8
        $region44: #{tpu_custom_call.1} parent=27 // pred_fallthru
          _
        // Predicated region
        $region45: #{tpu_custom_call.1} parent=27 // pred_check
          %p420 = pneg %p169
        $region46: #{tpu_custom_call.1} parent=27 // pred_check_branch
          %422 = sbr.rel (%p420) target = $region48
        $region47: #{tpu_custom_call.1} parent=27 // pred_region
          %s423 = smul.u32 4, %s34
          %s425 = ssub.s32 512, 512
          %426 = vsyncadd %s396, %s425
          %s427 = smul.addr %s35, 4
          %s428 = sadd.s32 %s423, %s427
          %s429 = smul.addr %s33, 4
          %s430 = sadd.s32 %s428, %s429
          %s431 = smul.addr %s430, 128
          %s432 = scalar_lea.hbm %s3, %s431
          %s433 = sshll.u32 %s399, 4
          %s434 = int_to_ptr.vmem [resolvable:$true] %s433
          %439 = dma.vmem_to_hbm [thread:$0]  %s434, 512, %s432, %s396, 128, 128, 8
        $region48: #{tpu_custom_call.1} parent=27 // pred_fallthru
          _
      $region28: #{tpu_custom_call.1} parent=5 // pred_fallthru
        _
      %p440 = scmp.le.s32.totalorder 2, %s22
      // Predicated region
      $region49: #{tpu_custom_call.1} parent=5 // pred_check
        %p441 = pneg %p440
      $region50: #{tpu_custom_call.1} parent=5 // pred_check_branch
        %443 = sbr.rel (%p441) target = $region52
      $region51: #{tpu_custom_call.1} parent=5 // pred_region
        %s444 = ssub.s32 %s22, 2
        // Predicated region
        $region53: #{tpu_custom_call.1} parent=51 // pred_check
          %p445 = pneg %p145
        $region54: #{tpu_custom_call.1} parent=51 // pred_check_branch
          %447 = sbr.rel (%p445) target = $region56
        $region55: #{tpu_custom_call.1} parent=51 // pred_region
          %s448 = sand.u32 %s130, 1
          %s449 = scalar_lea.sflag [#allocation4], %s448
          %s450 = sand.u32 %s130, 1
          %s451 = smul.addr %s450, 32
          %s452 = scalar_lea.vmem [#allocation7], %s451
          %453 = dma.done %s449, 512
        $region56: #{tpu_custom_call.1} parent=51 // pred_fallthru
          _
        // Predicated region
        $region57: #{tpu_custom_call.1} parent=51 // pred_check
          %p454 = pneg %p175
        $region58: #{tpu_custom_call.1} parent=51 // pred_check_branch
          %456 = sbr.rel (%p454) target = $region60
        $region59: #{tpu_custom_call.1} parent=51 // pred_region
          %s457 = sand.u32 %s160, 1
          %s458 = scalar_lea.sflag [#allocation9], %s457
          %s459 = sand.u32 %s160, 1
          %s460 = smul.addr %s459, 32
          %s461 = scalar_lea.vmem [#allocation8], %s460
          %462 = dma.done %s458, 512
        $region60: #{tpu_custom_call.1} parent=51 // pred_fallthru
          _
      $region52: #{tpu_custom_call.1} parent=5 // pred_fallthru
        _
    $region6: #{tpu_custom_call.1} parent=1 // loop_footer
      %s26 = sadd.s32 1, %s22
    $region7: #{tpu_custom_call.1} parent=1 // loop_footer_branch
      %21 = sbr.rel target = $region3
    $region8: #{tpu_custom_call.1} parent=1 // loop_exit
      _
    %463 = vsyncpa [#allocation3], 1
    %s464 = scalar_lea.sflag [#allocation3], 1
    %465 = vsyncpa %s464, 1
    %466 = vsyncpa [#allocation6], 1
    %s467 = scalar_lea.sflag [#allocation6], 1
    %468 = vsyncpa %s467, 1
    %469 = vsyncpa [#allocation4], 1
    %s470 = scalar_lea.sflag [#allocation4], 1
    %471 = vsyncpa %s470, 1
    %472 = vsyncpa [#allocation9], 1
    %s473 = scalar_lea.sflag [#allocation9], 1
    %474 = vsyncpa %s473, 1

</llo_original>
